<compile_context>
chip_gen: v6e
topology: v6e:2x2x1
jax: 0.10.0
libtpu: 0.0.40
codegen_flags: <defaults>
</compile_context>

<pallas_src>
import jax
import jax.numpy as jnp
from jax.experimental import pallas as pl
from jax.experimental.pallas import tpu as pltpu


def _round_up(x, m):
    return ((x + m - 1) // m) * m


def _np_block_kernel(x_ref, w_ref, b_ref, o_ref):
    # x_ref: (TM, K)  w_ref: (K, N)  b_ref: (1, N)  o_ref: (TM, N)
    y = jnp.dot(x_ref[...], w_ref[...], preferred_element_type=jnp.float32)
    y = y + b_ref[...]                      # broadcast bias over rows
    o_ref[...] = jnp.maximum(y, 0.0).astype(o_ref.dtype)


def np_block_relu2d(x, weight, bias, *, target_tm=1024):
    """x: (B, S, C_in); weight: (C_out, C_in); bias: (C_out,) -> (B, S, C_out)."""
    B, S, C_in = x.shape
    C_out = weight.shape[0]
    M, K = B * S, C_in
    N = _round_up(C_out, 128)               # lane-dense output width

    itemsize = jnp.dtype(x.dtype).itemsize

    # ---- pick the row-tile size TM from an explicit VMEM budget -------------
    # Double-buffered x tile + double-buffered out tile + resident weight/bias.
    vmem_budget = 24 * 1024 * 1024          # conservative: fits v7x's 64 MiB
    resident_bytes = K * N * itemsize + N * itemsize
    per_row_bytes = 2 * K * itemsize + 2 * N * itemsize
    tm_cap = max(8, (vmem_budget - resident_bytes) // per_row_bytes)
    tm_cap = (tm_cap // 8) * 8
    TM = min(target_tm, _round_up(M, 8), tm_cap)
    TM = max(8, (TM // 8) * 8)

    M_pad = _round_up(M, TM)
    grid_m = M_pad // TM

    # ---- pad operands (zeros: padded rows/cols are sliced off afterwards) ---
    x2d = x.reshape(M, K)
    if M_pad != M:
        x2d = jnp.pad(x2d, ((0, M_pad - M), (0, 0)))
    w_t = weight.T                           # (K, C_out)
    if N != C_out:
        w_t = jnp.pad(w_t, ((0, 0), (0, N - C_out)))
        b2d = jnp.pad(bias, (0, N - C_out)).reshape(1, N)
    else:
        b2d = bias.reshape(1, N)

    cost = pl.CostEstimate(
        flops=2 * M_pad * K * N,
        transcendentals=0,
        bytes_accessed=itemsize * (M_pad * K + K * N + N + M_pad * N),
    )

    out2d = pl.pallas_call(
        _np_block_kernel,
        out_shape=jax.ShapeDtypeStruct((M_pad, N), x.dtype),
        grid=(grid_m,),
        in_specs=[
            pl.BlockSpec((TM, K), lambda i: (i, 0)),   # x row tile (pipelined)
            pl.BlockSpec((K, N), lambda i: (0, 0)),    # weight: VMEM-resident
            pl.BlockSpec((1, N), lambda i: (0, 0)),    # bias: VMEM-resident
        ],
        out_specs=pl.BlockSpec((TM, N), lambda i: (i, 0)),
        compiler_params=pltpu.CompilerParams(
            dimension_semantics=("parallel",),
            vmem_limit_bytes=32 * 1024 * 1024,
        ),
        cost_estimate=cost,
    )(x2d, w_t, b2d)

    return out2d[:M, :C_out].reshape(B, S, C_out)


def init_params(key, in_channels, out_channels, dtype=jnp.float32):
    """Deterministic replica of create_linear(): kaiming_normal_ weight,
    default nn.Linear uniform bias."""
    kw, kb = jax.random.split(key)
    # kaiming_normal_ (fan_in, leaky_relu a=0): std = sqrt(2 / fan_in)
    std = (2.0 / in_channels) ** 0.5
    weight = std * jax.random.normal(kw, (out_channels, in_channels), dtype=dtype)
    # nn.Linear default bias init: U(-1/sqrt(fan_in), 1/sqrt(fan_in))
    bound = 1.0 / (in_channels ** 0.5)
    bias = jax.random.uniform(kb, (out_channels,), dtype=dtype,
                              minval=-bound, maxval=bound)
    return weight, bias


if __name__ == "__main__":
    key = jax.random.PRNGKey(0)
    k_x, k_p = jax.random.split(key)

    B, S, C_in, C_out = 2, 8, 32, 32
    x = jax.random.normal(k_x, (B, S, C_in), dtype=jnp.float32)
    weight, bias = init_params(k_p, C_in, C_out)

    out = np_block_relu2d(x, weight, bias)
    out = jax.block_until_ready(out)

    # Sanity check against pure-JAX reference of the PyTorch forward.
    ref = jnp.maximum(jnp.einsum("bsk,nk->bsn", x, weight) + bias, 0.0)
    assert out.shape == (B, S, C_out)
    assert jnp.allclose(out, ref, atol=1e-5, rtol=1e-5)

    # Second, larger/unaligned check to exercise the M-tiling + N-padding path.
    k_x2, k_p2 = jax.random.split(k_p)
    B2, S2, C_in2, C_out2 = 4, 600, 48, 96   # M=2400 (multi-tile), N padded 96->128
    x2 = jax.random.normal(k_x2, (B2, S2, C_in2), dtype=jnp.float32)
    w2, b2 = init_params(k_p2, C_in2, C_out2)
    out2 = jax.block_until_ready(np_block_relu2d(x2, w2, b2, target_tm=512))
    ref2 = jnp.maximum(jnp.einsum("bsk,nk->bsn", x2, w2) + b2, 0.0)
    assert out2.shape == (B2, S2, C_out2)
    assert jnp.allclose(out2, ref2, atol=1e-4, rtol=1e-4)

    print("KERNEL_OK")
</pallas_src>

<mosaic_0001>
module attributes {stable_mosaic.version = 11 : i64} {
  func.func @_np_block_kernel(%arg0: i32, %arg1: memref<16x32xf32, #tpu.memory_space<vmem>>, %arg2: memref<32x128xf32, #tpu.memory_space<vmem>>, %arg3: memref<1x128xf32, #tpu.memory_space<vmem>>, %arg4: memref<16x128xf32, #tpu.memory_space<vmem>>) attributes {dimension_semantics = [#tpu.dimension_semantics<parallel>], iteration_bounds = array<i64: 1>, scalar_prefetch = 0 : i64, scratch_operands = 0 : i64, tpu.core_type = #tpu.core_type<tc>, window_params = [{transform_indices = @transform_0, window_bounds = array<i64: 16, 32>}, {pipeline_mode = #tpu.pipeline_mode<synchronous>, transform_indices = @transform_1, window_bounds = array<i64: 32, 128>}, {pipeline_mode = #tpu.pipeline_mode<synchronous>, transform_indices = @transform_2, window_bounds = array<i64: 1, 128>}, {transform_indices = @transform_3, window_bounds = array<i64: 16, 128>}]} {
    %c0 = arith.constant 0 : index
    %c0_0 = arith.constant 0 : index
    %0 = vector.load %arg1[%c0, %c0_0] : memref<16x32xf32, #tpu.memory_space<vmem>>, vector<16x32xf32>
    %c0_1 = arith.constant 0 : index
    %c0_2 = arith.constant 0 : index
    %1 = vector.load %arg2[%c0_1, %c0_2] : memref<32x128xf32, #tpu.memory_space<vmem>>, vector<32x128xf32>
    %cst = arith.constant dense<0.000000e+00> : vector<16x128xf32>
    %2 = tpu.matmul %0, %1, %cst {dimension_numbers = #tpu.dot_dimension_numbers<[1], [0], [0], [1], [0, 0, 1, 1], [], []>} : vector<16x32xf32>, vector<32x128xf32>, vector<16x128xf32> -> vector<16x128xf32>
    %c0_3 = arith.constant 0 : index
    %c0_4 = arith.constant 0 : index
    %3 = vector.load %arg3[%c0_3, %c0_4] : memref<1x128xf32, #tpu.memory_space<vmem>>, vector<1x128xf32>
    %4 = vector.broadcast %3 : vector<1x128xf32> to vector<16x128xf32>
    %5 = arith.addf %2, %4 : vector<16x128xf32>
    %cst_5 = arith.constant 0.000000e+00 : f32
    %6 = vector.broadcast %cst_5 : f32 to vector<16x128xf32>
    %7 = arith.maximumf %5, %6 : vector<16x128xf32>
    %c0_6 = arith.constant 0 : index
    %c0_7 = arith.constant 0 : index
    %8 = vector.load %arg4[%c0_6, %c0_7] : memref<16x128xf32, #tpu.memory_space<vmem>>, vector<16x128xf32>
    tpu.vector_store %arg4[%c0_6, %c0_7], %7 {strides = array<i32>} : memref<16x128xf32, #tpu.memory_space<vmem>>, vector<16x128xf32>,
    return
  }
  func.func @transform_0(%arg0: i32) -> (i32, i32) {
    %c0_i32 = arith.constant 0 : i32
    %c0_i32_0 = arith.constant 0 : i32
    return %arg0, %c0_i32 : i32, i32
  }
  func.func @transform_1(%arg0: i32) -> (i32, i32) {
    %c0_i32 = arith.constant 0 : i32
    %c0_i32_0 = arith.constant 0 : i32
    %c0_i32_1 = arith.constant 0 : i32
    return %c0_i32, %c0_i32_0 : i32, i32
  }
  func.func @transform_2(%arg0: i32) -> (i32, i32) {
    %c0_i32 = arith.constant 0 : i32
    %c0_i32_0 = arith.constant 0 : i32
    %c0_i32_1 = arith.constant 0 : i32
    return %c0_i32, %c0_i32_0 : i32, i32
  }
  func.func @transform_3(%arg0: i32) -> (i32, i32) {
    %c0_i32 = arith.constant 0 : i32
    %c0_i32_0 = arith.constant 0 : i32
    return %arg0, %c0_i32 : i32, i32
  }
}

</mosaic_0001>

<llo_original>
// kernel: tpu_custom_call.1
$region0: #{tpu_custom_call.1}
  #allocation0 [shape = 'u32[]', space=smem, size = 0x4, offset = 0x4, fixed_abs, tag = 'smem constant byte address 0x4 - core index']
  #allocation1 [shape = 'u32[144,128]{1,0:T(1,128)}', space=vmem, size = 0x12000, scoped, tag = 'internal scratch']
  %s0 = inlined_call_operand.hbm [shape: f32[16,32], index: 0, kind: input, shape index: {}]
  %s1 = inlined_call_operand.hbm [shape: f32[32,128], index: 1, kind: input, shape index: {}]
  %s2 = inlined_call_operand.vmem [shape: f32[1,128], index: 2, kind: input, shape index: {}]
  %s3 = inlined_call_operand.hbm [shape: f32[16,128], index: 3, kind: output, shape index: {}]
  %s4 = sld [smem:[#allocation0]]
  $region30: #{tpu_custom_call.1} parent=0
    _
  %s6 = ssub.s32 1, %s4
  %s7 = scalar_select 0, %s6, %s4
  $region1: #{tpu_custom_call.1} parent=0
    #allocation2 [shape = 'u8[8192]{0}', space=vmem, size = 0x2000, scoped, tag = 'input window, operand 0, single buffered']
    #allocation3 [shape = 's32[1]{0}', space=sflag, size = 0x4, scoped, tag = 'scoped memory for tpu_custom_call.1']
    #allocation4 [shape = 's32[1]{0}', space=sflag, size = 0x4, scoped, tag = 'scoped memory for tpu_custom_call.1']
    #allocation5 [shape = 'u8[16384]{0}', space=vmem, size = 0x4000, scoped, tag = 'input window, operand 1, single buffered']
    #allocation6 [shape = 's32[1]{0}', space=sflag, size = 0x4, scoped, tag = 'scoped memory for tpu_custom_call.1']
    #allocation7 [shape = 'u8[8192]{0}', space=vmem, size = 0x2000, scoped, tag = 'output window, operand 0, single buffered']
    %8 = vsyncpa [#allocation3], 0
    %9 = vsyncpa [#allocation6], 0
    %10 = vsyncpa [#allocation4], 0
    // Predicated region
    $region2: #{tpu_custom_call.1} parent=1 // pred_check
      _
    $region3: #{tpu_custom_call.1} parent=1 // pred_check_branch
      %12 = sbr.rel (0) target = $region5
    $region4: #{tpu_custom_call.1} parent=1 // pred_region
      %s14 = ssub.s32 256, 256
      %15 = vsyncadd [#allocation3], %s14
      %s16 = sshll.u32 [#allocation2], 4
      %s17 = int_to_ptr.vmem [resolvable:$true] %s16
      %22 = dma.hbm_to_vmem [thread:$0]  %s0, 256, %s17, [#allocation3], 128, 128, 8
    $region5: #{tpu_custom_call.1} parent=1 // pred_fallthru
      _
    // Predicated region
    $region6: #{tpu_custom_call.1} parent=1 // pred_check
      _
    $region7: #{tpu_custom_call.1} parent=1 // pred_check_branch
      %24 = sbr.rel (0) target = $region9
    $region8: #{tpu_custom_call.1} parent=1 // pred_region
      %s26 = ssub.s32 512, 512
      %27 = vsyncadd [#allocation6], %s26
      %s28 = sshll.u32 [#allocation5], 4
      %s29 = int_to_ptr.vmem [resolvable:$true] %s28
      %34 = dma.hbm_to_vmem [thread:$0]  %s1, 512, %s29, [#allocation6], 128, 128, 8
    $region9: #{tpu_custom_call.1} parent=1 // pred_fallthru
      _
    // Predicated region
    $region10: #{tpu_custom_call.1} parent=1 // pred_check
      _
    $region11: #{tpu_custom_call.1} parent=1 // pred_check_branch
      %36 = sbr.rel (0) target = $region13
    $region12: #{tpu_custom_call.1} parent=1 // pred_region
      _
    $region13: #{tpu_custom_call.1} parent=1 // pred_fallthru
      _
    // Predicated region
    $region14: #{tpu_custom_call.1} parent=1 // pred_check
      _
    $region15: #{tpu_custom_call.1} parent=1 // pred_check_branch
      %38 = sbr.rel (0) target = $region17
    $region16: #{tpu_custom_call.1} parent=1 // pred_region
      %39 = dma.done [#allocation3], 256
    $region17: #{tpu_custom_call.1} parent=1 // pred_fallthru
      _
    // Predicated region
    $region18: #{tpu_custom_call.1} parent=1 // pred_check
      _
    $region19: #{tpu_custom_call.1} parent=1 // pred_check_branch
      %41 = sbr.rel (0) target = $region21
    $region20: #{tpu_custom_call.1} parent=1 // pred_region
      %42 = dma.done [#allocation6], 512
    $region21: #{tpu_custom_call.1} parent=1 // pred_fallthru
      _
    %v43 = vld [vmem:[#allocation2] sm:$0xff]
    %v44 = vld [vmem:[#allocation2 + $0x8] sm:$0xff]
    %v45 = vld [vmem:[#allocation5] sm:$0xff]
    %v46 = vld [vmem:[#allocation5 + $0x8] sm:$0xff]
    %v47 = vld [vmem:[#allocation5 + $0x10] sm:$0xff]
    %v48 = vld [vmem:[#allocation5 + $0x18] sm:$0xff]
    %v49 = vld [vmem:[%s2] sm:$0x1]
    %v51 = vlaneseq
    %v52 = vshrl.u32 %v51, 7
    %v53 = vsub.s32 0, %v52
    %v54 = vrot.slane %v49, %v53
    %vm56 = vcmask 261120
    %v58 = vsel %vm56, %v43, 0
    %v61 = vsel %vm56, %v44, 0
    %63 = vmatprep.subr.mxu0 0.0
    %64 = vmatpush1.msra.mxu0 0.0
    %65 = vmatprep.subr.mxu0 0.0
    %66 = vmatpush1.msra.mxu0 0.0
    %67 = vmatprep.subr.mxu0 0.0
    %68 = vmatpush1.msra.mxu0 0.0
    %69 = vmatprep.subr.mxu0 0.0
    %70 = vmatpush1.msra.mxu0 0.0
    %71 = vmatprep.subr.mxu0 0.0
    %72 = vmatpush1.msra.mxu0 0.0
    %73 = vmatprep.subr.mxu0 0.0
    %74 = vmatpush1.msra.mxu0 0.0
    %75 = vmatprep.subr.mxu0 0.0
    %76 = vmatpush1.msra.mxu0 0.0
    %77 = vmatprep.subr.mxu0 0.0
    %78 = vmatpush1.msra.mxu0 0.0
    %79 = vmatprep.subr.mxu0 0.0
    %80 = vmatpush1.msra.mxu0 0.0
    %81 = vmatprep.subr.mxu0 0.0
    %82 = vmatpush1.msra.mxu0 0.0
    %83 = vmatprep.subr.mxu0 0.0
    %84 = vmatpush1.msra.mxu0 0.0
    %85 = vmatprep.subr.mxu0 0.0
    %86 = vmatpush1.msra.mxu0 0.0
    %87 = vmatprep.subr.mxu0 0.0
    %88 = vmatpush1.msra.mxu0 %v48
    %89 = vmatprep.subr.mxu0 0.0
    %90 = vmatpush1.msra.mxu0 %v47
    %91 = vmatprep.subr.mxu0 0.0
    %92 = vmatpush1.msra.mxu0 %v46
    %93 = vmatprep.subr.mxu0 0.0
    %94 = vmatpush1.msra.mxu0 %v45
    %95 = vmatprep.subr.mxu0 0.0
    %96 = vmatpush2.msra.mxu0 0.0
    %97 = vmatprep.subr.mxu0 0.0
    %98 = vmatpush2.msra.mxu0 0.0
    %99 = vmatprep.subr.mxu0 0.0
    %100 = vmatpush2.msra.mxu0 0.0
    %101 = vmatprep.subr.mxu0 0.0
    %102 = vmatpush2.msra.mxu0 0.0
    %103 = vmatprep.subr.mxu0 0.0
    %104 = vmatpush2.msra.mxu0 0.0
    %105 = vmatprep.subr.mxu0 0.0
    %106 = vmatpush2.msra.mxu0 0.0
    %107 = vmatprep.subr.mxu0 0.0
    %108 = vmatpush2.msra.mxu0 0.0
    %109 = vmatprep.subr.mxu0 0.0
    %110 = vmatpush2.msra.mxu0 0.0
    %111 = vmatprep.subr.mxu0 0.0
    %112 = vmatpush2.msra.mxu0 0.0
    %113 = vmatprep.subr.mxu0 0.0
    %114 = vmatpush2.msra.mxu0 0.0
    %115 = vmatprep.subr.mxu0 0.0
    %116 = vmatpush2.msra.mxu0 0.0
    %117 = vmatprep.subr.mxu0 0.0
    %118 = vmatpush2.msra.mxu0 0.0
    %119 = vmatprep.subr.mxu0 0.0
    %120 = vmatpush2.msra.mxu0 0.0
    %121 = vmatprep.subr.mxu0 0.0
    %122 = vmatpush2.msra.mxu0 0.0
    %123 = vmatprep.subr.mxu0 0.0
    %124 = vmatpush2.msra.mxu0 0.0
    %125 = vmatprep.subr.mxu0 0.0
    %126 = vmatpush2.msra.mxu0 0.0
    %127 = vmatprep.mubr.f32.mxu0 0.0
    %128 = vmatmul.mubr.f32.gmra.mxu0 %v58
    %v129 = vpop.f32.mrf.mxu0
    %v130 = vadd.f32 %v54, %v129
    %v131 = vpop.f32.mrf.mxu0
    %132 = vmatprep.mubr.f32.mxu0 0.0
    %133 = vmatmul.mubr.f32.gmra.mxu0 %v61
    %v134 = vpop.f32.mrf.mxu0
    %v135 = vadd.f32 %v54, %v134
    %v136 = vpop.f32.mrf.mxu0
    %137 = vdwg.mxu0
    %v138 = vmax.f32 %v130, 0.0
    %v139 = vmax.f32 %v135, 0.0
    %140 = vst [vmem:[#allocation7] sm:$0xff] %v138
    %141 = vst [vmem:[#allocation7 + $0x8] sm:$0xff] %v139
    // Predicated region
    $region22: #{tpu_custom_call.1} parent=1 // pred_check
      _
    $region23: #{tpu_custom_call.1} parent=1 // pred_check_branch
      %143 = sbr.rel (0) target = $region25
    $region24: #{tpu_custom_call.1} parent=1 // pred_region
      %s145 = ssub.s32 256, 256
      %146 = vsyncadd [#allocation4], %s145
      %s147 = sshll.u32 [#allocation7], 4
      %s148 = int_to_ptr.vmem [resolvable:$true] %s147
      %153 = dma.vmem_to_hbm [thread:$0]  %s148, 256, %s3, [#allocation4], 128, 128, 8
    $region25: #{tpu_custom_call.1} parent=1 // pred_fallthru
      _
    // Predicated region
    $region26: #{tpu_custom_call.1} parent=1 // pred_check
      _
    $region27: #{tpu_custom_call.1} parent=1 // pred_check_branch
      %155 = sbr.rel (0) target = $region29
    $region28: #{tpu_custom_call.1} parent=1 // pred_region
      %156 = dma.done [#allocation4], 256
    $region29: #{tpu_custom_call.1} parent=1 // pred_fallthru
      _
    %157 = vsyncpa [#allocation3], 1
    %158 = vsyncpa [#allocation6], 1
    %159 = vsyncpa [#allocation4], 1

</llo_original>
